<compile_context>
chip_gen: v6e
topology: v6e:2x2x1
jax: 0.10.0
libtpu: 0.0.40
codegen_flags: <defaults>
</compile_context>

<pallas_src>
import math
from functools import partial

import numpy as np
import jax
import jax.numpy as jnp
from jax import lax
from jax.experimental import pallas as pl
from jax.experimental.pallas import tpu as pltpu


def _gaussian_taps_1d(kernel_size: int, sigma: float):
    """Normalized 1-D taps as Python floats (trace-time immediates).

    The module's 2-D weight is exactly the outer product of this vector with
    itself (the 1/(sigma*sqrt(2*pi)) prefactor cancels after normalization).
    Keeps the 2*sigma in the exponent on purpose (see NOTE above)."""
    mean = (kernel_size - 1) / 2.0
    g = [math.exp(-(((i - mean) / (2.0 * sigma)) ** 2)) for i in range(kernel_size)]
    s = sum(g)
    return tuple(v / s for v in g)


def _choose_block_rows(nc: int, hw: int, itemsize: int) -> int:
    """Rows (N*C images) per block.

    ~1.5 MiB input blocks keep double-buffered in+out plus the ~3 block-sized
    f32 intermediates well under the 16/32 MiB scoped-VMEM defaults
    (v5e/v6e/v7x) while amortizing the ~0.35 us per-step overhead."""
    # Sublane-packing requirement for non-full-dim second-to-last block dims.
    sub = {4: 8, 2: 16, 1: 32}.get(itemsize, 8)
    target_bytes = 3 * 512 * 1024  # ~1.5 MiB per input block
    # TODO(synk): for very large H*W (a single image row >> target) add a second
    # grid axis over H with a pad-row halo instead of taking whole-row slabs.
    rows = max(sub, (target_bytes // max(1, hw * itemsize)) // sub * sub)
    # v7x megacore: guarantee >= 2 'parallel' grid steps when there is enough work.
    if nc >= 2 * sub:
        half = ((-(-nc // 2)) + sub - 1) // sub * sub
        rows = min(rows, half)
    if rows >= nc:
        return nc  # full-dim block is always legal for the second-to-last dim
    return rows


def _smoothing_kernel(x_ref, hmask_ref, vmask_ref, o_ref, *, W: int, K: int,
                      pad: int, taps):
    """Separable depthwise Gaussian on a (rows, H*W) lane-dense slab.

    x_ref:     VMEM (block_rows, H*W) — each row is one (n, c) image, flattened.
    hmask_ref: VMEM (subp, H*W) — row m is the {0, tap} multiplier for the m-th
               off-center horizontal tap (zero padding + wrap-kill folded in).
    vmask_ref: VMEM (subp, H*W) — same for the vertical pass.
    o_ref:     VMEM (block_rows, H*W), lane-dense store.
    Shifts along W are flat-axis shifts by d; shifts along H are shifts by e*W.
    """
    x = x_ref[...].astype(jnp.float32)   # load once; f32 accumulation throughout
    hm = hmask_ref[...]
    vm = vmask_ref[...]
    center = taps[pad]                   # Python float immediate

    # ---- horizontal pass (along W) ----
    h = center * x
    m = 0
    for kw in range(K):                  # K is small & static -> fully unrolled
        d = kw - pad
        if d == 0:
            continue
        shifted = jnp.roll(x, -d, axis=1)            # shifted[f] = x[f + d] (wrap masked)
        h = h + hm[m:m + 1, :] * shifted             # single vmul + vadd per tap
        m += 1

    # ---- vertical pass (along H) ----
    acc = center * h
    m = 0
    for kh in range(K):
        e = kh - pad
        if e == 0:
            continue
        shifted = jnp.roll(h, -e * W, axis=1)        # shifted[f] = h[f + e*W]
        acc = acc + vm[m:m + 1, :] * shifted
        m += 1

    o_ref[...] = acc.astype(o_ref.dtype)             # lane-dense store


def gaussian_smoothing_2d(x: jnp.ndarray, *, kernel_size: int, sigma: float) -> jnp.ndarray:
    """Forward of GaussianSmoothing(channels=C, kernel_size, sigma, dim=2) on NCHW x."""
    N, C, H, W = x.shape
    K = int(kernel_size)
    # TODO(synk): even kernel_size gives (H+1, W+1) output in PyTorch; only odd K supported here.
    assert K % 2 == 1, "odd kernel_size required for same-size output (padding=K//2)"
    pad = K // 2
    taps = _gaussian_taps_1d(K, sigma)

    if K == 1:
        return x  # single normalized tap == 1.0, padding == 0

    NC, HW = N * C, H * W
    x2 = x.reshape(NC, HW)  # lane-dense layout: last dim H*W

    # Precompute per-tap {0, tap} edge-mask rows at trace time (numpy): folds the
    # tap value and the zero padding into one multiplier and kills roll wrap.
    lanes = np.arange(HW)
    col = lanes % W
    row = lanes // W
    subp = max(8, (-(-(K - 1) // 8)) * 8)  # sublane-padded mask row count
    h_masks = np.zeros((subp, HW), np.float32)
    v_masks = np.zeros((subp, HW), np.float32)
    m = 0
    for k in range(K):
        d = k - pad
        if d == 0:
            continue
        h_masks[m] = np.where((col + d >= 0) & (col + d < W), taps[k], 0.0)
        v_masks[m] = np.where((row + d >= 0) & (row + d < H), taps[k], 0.0)
        m += 1

    itemsize = int(np.dtype(x.dtype).itemsize)
    block_rows = _choose_block_rows(NC, HW, itemsize)
    grid = (pl.cdiv(NC, block_rows),)

    kernel = partial(_smoothing_kernel, W=W, K=K, pad=pad, taps=taps)

    out2 = pl.pallas_call(
        kernel,
        out_shape=jax.ShapeDtypeStruct((NC, HW), x.dtype),
        grid=grid,
        in_specs=[
            pl.BlockSpec((block_rows, HW), lambda r: (r, 0)),
            pl.BlockSpec((subp, HW), lambda r: (0, 0)),   # resident mask rows
            pl.BlockSpec((subp, HW), lambda r: (0, 0)),
        ],
        out_specs=pl.BlockSpec((block_rows, HW), lambda r: (r, 0)),
        compiler_params=pltpu.CompilerParams(
            dimension_semantics=("parallel",),
            vmem_limit_bytes=32 * 1024 * 1024),
    )(x2, jnp.asarray(h_masks), jnp.asarray(v_masks))

    return out2.reshape(N, C, H, W)


# ----------------------------- reference (pure JAX) -----------------------------

def _make_torch_style_weight(channels: int, kernel_size: int, sigma: float) -> jnp.ndarray:
    """Reproduce GaussianSmoothing.__init__ 2-D weight construction exactly."""
    ks = jnp.arange(kernel_size, dtype=jnp.float32)
    mean = (kernel_size - 1) / 2.0
    gi, gj = jnp.meshgrid(ks, ks, indexing="ij")
    kern = jnp.ones((), jnp.float32)
    for mgrid in (gi, gj):
        kern = kern * (1.0 / (sigma * math.sqrt(2.0 * math.pi))
                       * jnp.exp(-(((mgrid - mean) / (2.0 * sigma)) ** 2)))
    kern = kern / jnp.sum(kern)
    return jnp.broadcast_to(kern, (channels, 1, kernel_size, kernel_size)).astype(jnp.float32)


def _reference(x, channels, kernel_size, sigma):
    """F.conv2d(x, weight, groups=C, padding=K//2) equivalent."""
    w = _make_torch_style_weight(channels, kernel_size, sigma)
    p = kernel_size // 2
    return lax.conv_general_dilated(
        x, w, window_strides=(1, 1), padding=((p, p), (p, p)),
        dimension_numbers=("NCHW", "OIHW", "NCHW"),
        feature_group_count=channels,
        precision=lax.Precision.HIGHEST)


if __name__ == "__main__":
    # Module config: GaussianSmoothing(channels=4, kernel_size=3, sigma=1.0, dim=2)
    channels, kernel_size, sigma = 4, 3, 1.0
    N, H, W = 2, 16, 16

    key = jax.random.PRNGKey(0)
    x = jax.random.normal(key, (N, channels, H, W), dtype=jnp.float32)

    out = gaussian_smoothing_2d(x, kernel_size=kernel_size, sigma=sigma)
    out = jax.block_until_ready(out)

    ref = _reference(x, channels, kernel_size, sigma)
    assert out.shape == ref.shape == (N, channels, H, W)
    max_err = float(jnp.max(jnp.abs(out - ref)))
    assert jnp.allclose(out, ref, atol=1e-5, rtol=1e-5), (
        f"mismatch vs reference, max abs err = {max_err}")

    print("KERNEL_OK")
</pallas_src>

<mosaic_0001>
module attributes {stable_mosaic.version = 11 : i64} {
  func.func @_smoothing_kernel(%arg0: i32, %arg1: memref<8x256xf32, #tpu.memory_space<vmem>>, %arg2: memref<8x256xf32, #tpu.memory_space<vmem>>, %arg3: memref<8x256xf32, #tpu.memory_space<vmem>>, %arg4: memref<8x256xf32, #tpu.memory_space<vmem>>) attributes {dimension_semantics = [#tpu.dimension_semantics<parallel>], iteration_bounds = array<i64: 1>, scalar_prefetch = 0 : i64, scratch_operands = 0 : i64, tpu.core_type = #tpu.core_type<tc>, window_params = [{transform_indices = @transform_0, window_bounds = array<i64: 8, 256>}, {pipeline_mode = #tpu.pipeline_mode<synchronous>, transform_indices = @transform_1, window_bounds = array<i64: 8, 256>}, {pipeline_mode = #tpu.pipeline_mode<synchronous>, transform_indices = @transform_2, window_bounds = array<i64: 8, 256>}, {transform_indices = @transform_3, window_bounds = array<i64: 8, 256>}]} {
    %c0 = arith.constant 0 : index
    %c0_0 = arith.constant 0 : index
    %0 = vector.load %arg1[%c0, %c0_0] : memref<8x256xf32, #tpu.memory_space<vmem>>, vector<8x256xf32>
    %c0_1 = arith.constant 0 : index
    %c0_2 = arith.constant 0 : index
    %1 = vector.load %arg2[%c0_1, %c0_2] : memref<8x256xf32, #tpu.memory_space<vmem>>, vector<8x256xf32>
    %c0_3 = arith.constant 0 : index
    %c0_4 = arith.constant 0 : index
    %2 = vector.load %arg3[%c0_3, %c0_4] : memref<8x256xf32, #tpu.memory_space<vmem>>, vector<8x256xf32>
    %cst = arith.constant 0.3909913 : f32
    %3 = vector.broadcast %cst : f32 to vector<8x256xf32>
    %4 = arith.mulf %3, %0 : vector<8x256xf32>
    %5 = vector.extract_strided_slice %0 {offsets = [0, 255], sizes = [8, 1], strides = [1, 1]} : vector<8x256xf32> to vector<8x1xf32>
    %6 = vector.extract_strided_slice %0 {offsets = [0, 0], sizes = [8, 255], strides = [1, 1]} : vector<8x256xf32> to vector<8x255xf32>
    %7 = tpu.concatenate %5, %6 in 1 : vector<8x1xf32>, vector<8x255xf32> -> vector<8x256xf32>
    %8 = vector.extract_strided_slice %1 {offsets = [0, 0], sizes = [1, 256], strides = [1, 1]} : vector<8x256xf32> to vector<1x256xf32>
    %9 = vector.broadcast %8 : vector<1x256xf32> to vector<8x256xf32>
    %10 = arith.mulf %9, %7 : vector<8x256xf32>
    %11 = arith.addf %4, %10 : vector<8x256xf32>
    %12 = vector.extract_strided_slice %0 {offsets = [0, 1], sizes = [8, 255], strides = [1, 1]} : vector<8x256xf32> to vector<8x255xf32>
    %13 = vector.extract_strided_slice %0 {offsets = [0, 0], sizes = [8, 1], strides = [1, 1]} : vector<8x256xf32> to vector<8x1xf32>
    %14 = tpu.concatenate %12, %13 in 1 : vector<8x255xf32>, vector<8x1xf32> -> vector<8x256xf32>
    %15 = vector.extract_strided_slice %1 {offsets = [1, 0], sizes = [1, 256], strides = [1, 1]} : vector<8x256xf32> to vector<1x256xf32>
    %16 = vector.broadcast %15 : vector<1x256xf32> to vector<8x256xf32>
    %17 = arith.mulf %16, %14 : vector<8x256xf32>
    %18 = arith.addf %11, %17 : vector<8x256xf32>
    %cst_5 = arith.constant 0.3909913 : f32
    %19 = vector.broadcast %cst_5 : f32 to vector<8x256xf32>
    %20 = arith.mulf %19, %18 : vector<8x256xf32>
    %21 = vector.extract_strided_slice %18 {offsets = [0, 240], sizes = [8, 16], strides = [1, 1]} : vector<8x256xf32> to vector<8x16xf32>
    %22 = vector.extract_strided_slice %18 {offsets = [0, 0], sizes = [8, 240], strides = [1, 1]} : vector<8x256xf32> to vector<8x240xf32>
    %23 = tpu.concatenate %21, %22 in 1 : vector<8x16xf32>, vector<8x240xf32> -> vector<8x256xf32>
    %24 = vector.extract_strided_slice %2 {offsets = [0, 0], sizes = [1, 256], strides = [1, 1]} : vector<8x256xf32> to vector<1x256xf32>
    %25 = vector.broadcast %24 : vector<1x256xf32> to vector<8x256xf32>
    %26 = arith.mulf %25, %23 : vector<8x256xf32>
    %27 = arith.addf %20, %26 : vector<8x256xf32>
    %28 = vector.extract_strided_slice %18 {offsets = [0, 16], sizes = [8, 240], strides = [1, 1]} : vector<8x256xf32> to vector<8x240xf32>
    %29 = vector.extract_strided_slice %18 {offsets = [0, 0], sizes = [8, 16], strides = [1, 1]} : vector<8x256xf32> to vector<8x16xf32>
    %30 = tpu.concatenate %28, %29 in 1 : vector<8x240xf32>, vector<8x16xf32> -> vector<8x256xf32>
    %31 = vector.extract_strided_slice %2 {offsets = [1, 0], sizes = [1, 256], strides = [1, 1]} : vector<8x256xf32> to vector<1x256xf32>
    %32 = vector.broadcast %31 : vector<1x256xf32> to vector<8x256xf32>
    %33 = arith.mulf %32, %30 : vector<8x256xf32>
    %34 = arith.addf %27, %33 : vector<8x256xf32>
    %c0_6 = arith.constant 0 : index
    %c0_7 = arith.constant 0 : index
    %35 = vector.load %arg4[%c0_6, %c0_7] : memref<8x256xf32, #tpu.memory_space<vmem>>, vector<8x256xf32>
    tpu.vector_store %arg4[%c0_6, %c0_7], %34 {strides = array<i32>} : memref<8x256xf32, #tpu.memory_space<vmem>>, vector<8x256xf32>,
    return
  }
  func.func @transform_0(%arg0: i32) -> (i32, i32) {
    %c0_i32 = arith.constant 0 : i32
    %c0_i32_0 = arith.constant 0 : i32
    return %arg0, %c0_i32 : i32, i32
  }
  func.func @transform_1(%arg0: i32) -> (i32, i32) {
    %c0_i32 = arith.constant 0 : i32
    %c0_i32_0 = arith.constant 0 : i32
    %c0_i32_1 = arith.constant 0 : i32
    return %c0_i32, %c0_i32_0 : i32, i32
  }
  func.func @transform_2(%arg0: i32) -> (i32, i32) {
    %c0_i32 = arith.constant 0 : i32
    %c0_i32_0 = arith.constant 0 : i32
    %c0_i32_1 = arith.constant 0 : i32
    return %c0_i32, %c0_i32_0 : i32, i32
  }
  func.func @transform_3(%arg0: i32) -> (i32, i32) {
    %c0_i32 = arith.constant 0 : i32
    %c0_i32_0 = arith.constant 0 : i32
    return %arg0, %c0_i32 : i32, i32
  }
}

</mosaic_0001>

<llo_original>
// kernel: tpu_custom_call.1
$region0: #{tpu_custom_call.1}
  #allocation0 [shape = 'u32[]', space=smem, size = 0x4, offset = 0x4, fixed_abs, tag = 'smem constant byte address 0x4 - core index']
  #allocation1 [shape = 'u32[144,128]{1,0:T(1,128)}', space=vmem, size = 0x12000, scoped, tag = 'internal scratch']
  %s0 = inlined_call_operand.hbm [shape: f32[8,256], index: 0, kind: input, shape index: {}]
  %s1 = inlined_call_operand.hbm [shape: f32[8,256], index: 1, kind: input, shape index: {}]
  %s2 = inlined_call_operand.hbm [shape: f32[8,256], index: 2, kind: input, shape index: {}]
  %s3 = inlined_call_operand.hbm [shape: f32[8,256], index: 3, kind: output, shape index: {}]
  %s4 = sld [smem:[#allocation0]]
  $region34: #{tpu_custom_call.1} parent=0
    _
  %s6 = ssub.s32 1, %s4
  %s7 = scalar_select 0, %s6, %s4
  $region1: #{tpu_custom_call.1} parent=0
    #allocation2 [shape = 'u8[8192]{0}', space=vmem, size = 0x2000, scoped, tag = 'input window, operand 0, single buffered']
    #allocation3 [shape = 's32[1]{0}', space=sflag, size = 0x4, scoped, tag = 'scoped memory for tpu_custom_call.1']
    #allocation4 [shape = 's32[1]{0}', space=sflag, size = 0x4, scoped, tag = 'scoped memory for tpu_custom_call.1']
    #allocation5 [shape = 'u8[8192]{0}', space=vmem, size = 0x2000, scoped, tag = 'input window, operand 1, single buffered']
    #allocation6 [shape = 's32[1]{0}', space=sflag, size = 0x4, scoped, tag = 'scoped memory for tpu_custom_call.1']
    #allocation7 [shape = 'u8[8192]{0}', space=vmem, size = 0x2000, scoped, tag = 'input window, operand 2, single buffered']
    #allocation8 [shape = 'u8[8192]{0}', space=vmem, size = 0x2000, scoped, tag = 'output window, operand 0, single buffered']
    %8 = vsyncpa [#allocation3], 0
    %9 = vsyncpa [#allocation6], 0
    %10 = vsyncpa [#allocation4], 0
    // Predicated region
    $region2: #{tpu_custom_call.1} parent=1 // pred_check
      _
    $region3: #{tpu_custom_call.1} parent=1 // pred_check_branch
      %12 = sbr.rel (0) target = $region5
    $region4: #{tpu_custom_call.1} parent=1 // pred_region
      %s14 = ssub.s32 256, 256
      %15 = vsyncadd [#allocation3], %s14
      %s17 = sshll.u32 [#allocation2], 4
      %s18 = int_to_ptr.vmem [resolvable:$true] %s17
      %20 = dma.hbm_to_vmem [thread:$0]  %s0, 256, %s18, [#allocation3]
    $region5: #{tpu_custom_call.1} parent=1 // pred_fallthru
      _
    // Predicated region
    $region6: #{tpu_custom_call.1} parent=1 // pred_check
      _
    $region7: #{tpu_custom_call.1} parent=1 // pred_check_branch
      %22 = sbr.rel (0) target = $region9
    $region8: #{tpu_custom_call.1} parent=1 // pred_region
      %s24 = ssub.s32 256, 256
      %25 = vsyncadd [#allocation6], %s24
      %s27 = sshll.u32 [#allocation5], 4
      %s28 = int_to_ptr.vmem [resolvable:$true] %s27
      %30 = dma.hbm_to_vmem [thread:$0]  %s1, 256, %s28, [#allocation6]
    $region9: #{tpu_custom_call.1} parent=1 // pred_fallthru
      _
    // Predicated region
    $region10: #{tpu_custom_call.1} parent=1 // pred_check
      _
    $region11: #{tpu_custom_call.1} parent=1 // pred_check_branch
      %32 = sbr.rel (0) target = $region13
    $region12: #{tpu_custom_call.1} parent=1 // pred_region
      %s34 = ssub.s32 256, 256
      %35 = vsyncadd [#allocation6], %s34
      %s37 = sshll.u32 [#allocation7], 4
      %s38 = int_to_ptr.vmem [resolvable:$true] %s37
      %40 = dma.hbm_to_vmem [thread:$0]  %s2, 256, %s38, [#allocation6]
    $region13: #{tpu_custom_call.1} parent=1 // pred_fallthru
      _
    // Predicated region
    $region14: #{tpu_custom_call.1} parent=1 // pred_check
      _
    $region15: #{tpu_custom_call.1} parent=1 // pred_check_branch
      %42 = sbr.rel (0) target = $region17
    $region16: #{tpu_custom_call.1} parent=1 // pred_region
      %43 = dma.done [#allocation3], 256
    $region17: #{tpu_custom_call.1} parent=1 // pred_fallthru
      _
    // Predicated region
    $region18: #{tpu_custom_call.1} parent=1 // pred_check
      _
    $region19: #{tpu_custom_call.1} parent=1 // pred_check_branch
      %45 = sbr.rel (0) target = $region21
    $region20: #{tpu_custom_call.1} parent=1 // pred_region
      %46 = dma.done [#allocation6], 256
    $region21: #{tpu_custom_call.1} parent=1 // pred_fallthru
      _
    // Predicated region
    $region22: #{tpu_custom_call.1} parent=1 // pred_check
      _
    $region23: #{tpu_custom_call.1} parent=1 // pred_check_branch
      %48 = sbr.rel (0) target = $region25
    $region24: #{tpu_custom_call.1} parent=1 // pred_region
      %49 = dma.done [#allocation6], 256
    $region25: #{tpu_custom_call.1} parent=1 // pred_fallthru
      _
    %v50 = vld [vmem:[#allocation2] sm:$0xff]
    %v51 = vld [vmem:[#allocation2 + $0x8] sm:$0xff]
    %v52 = vld [vmem:[#allocation5] sm:$0xff]
    %v53 = vld [vmem:[#allocation5 + $0x8] sm:$0xff]
    %v54 = vld [vmem:[#allocation7] sm:$0xff]
    %v55 = vld [vmem:[#allocation7 + $0x8] sm:$0xff]
    %v56 = vmul.f32 %v50, 0.3909913
    %v57 = vmul.f32 %v51, 0.3909913
    %59 = vrot.lane.b32.xlu0 %v51, 1
    %v60 = vpop.permute.xlu0 %59
    %63 = vrot.lane.b32.xlu0 %v50, 1
    %v64 = vpop.permute.xlu0 %63
    %vm65 = vcmask 7168
    %v66 = vsel %vm65, %v64, %v60
    %v69 = vsel %vm65, %v60, %v64
    %v70 = vlaneseq
    %v71 = vshrl.u32 %v70, 7
    %v72 = vsub.s32 0, %v71
    %v73 = vrot.slane %v52, %v72
    %v74 = vlaneseq
    %v75 = vshrl.u32 %v74, 7
    %v76 = vsub.s32 0, %v75
    %v77 = vrot.slane %v53, %v76
    %v78 = vmul.f32 %v73, %v69
    %v79 = vmul.f32 %v77, %v66
    %v80 = vadd.f32 %v56, %v78
    %v81 = vadd.f32 %v57, %v79
    %82 = vrot.lane.b32.xlu0 %v50, 127
    %v83 = vpop.permute.xlu0 %82
    %84 = vrot.lane.b32.xlu0 %v51, 127
    %v85 = vpop.permute.xlu0 %84
    %vm86 = vcmask 1039360
    %v87 = vsel %vm86, %v83, %v85
    %v91 = vsel %vm86, %v85, %v83
    %v92 = vlaneseq
    %v93 = vshrl.u32 %v92, 7
    %v94 = vsub.s32 1, %v93
    %v95 = vrot.slane %v52, %v94
    %v96 = vlaneseq
    %v97 = vshrl.u32 %v96, 7
    %v98 = vsub.s32 1, %v97
    %v99 = vrot.slane %v53, %v98
    %v100 = vmul.f32 %v95, %v87
    %v101 = vmul.f32 %v99, %v91
    %v102 = vadd.f32 %v80, %v100
    %v103 = vadd.f32 %v81, %v101
    %v104 = vmul.f32 %v102, 0.3909913
    %v105 = vmul.f32 %v103, 0.3909913
    %107 = vrot.lane.b32.xlu0 %v103, 16
    %v108 = vpop.permute.xlu0 %107
    %111 = vrot.lane.b32.xlu0 %v102, 16
    %v112 = vpop.permute.xlu0 %111
    %vm113 = vcmask 130048
    %v114 = vsel %vm113, %v112, %v108
    %v117 = vsel %vm113, %v108, %v112
    %v118 = vlaneseq
    %v119 = vshrl.u32 %v118, 7
    %v120 = vsub.s32 0, %v119
    %v121 = vrot.slane %v54, %v120
    %v122 = vlaneseq
    %v123 = vshrl.u32 %v122, 7
    %v124 = vsub.s32 0, %v123
    %v125 = vrot.slane %v55, %v124
    %v126 = vmul.f32 %v121, %v117
    %v127 = vmul.f32 %v125, %v114
    %v128 = vadd.f32 %v104, %v126
    %v129 = vadd.f32 %v105, %v127
    %130 = vrot.lane.b32.xlu0 %v102, 112
    %v131 = vpop.permute.xlu0 %130
    %132 = vrot.lane.b32.xlu0 %v103, 112
    %v133 = vpop.permute.xlu0 %132
    %vm134 = vcmask 916480
    %v135 = vsel %vm134, %v131, %v133
    %v139 = vsel %vm134, %v133, %v131
    %v140 = vlaneseq
    %v141 = vshrl.u32 %v140, 7
    %v142 = vsub.s32 1, %v141
    %v143 = vrot.slane %v54, %v142
    %v144 = vlaneseq
    %v145 = vshrl.u32 %v144, 7
    %v146 = vsub.s32 1, %v145
    %v147 = vrot.slane %v55, %v146
    %v148 = vmul.f32 %v143, %v135
    %v149 = vmul.f32 %v147, %v139
    %v150 = vadd.f32 %v128, %v148
    %v151 = vadd.f32 %v129, %v149
    %152 = vst [vmem:[#allocation8] sm:$0xff] %v150
    %153 = vst [vmem:[#allocation8 + $0x8] sm:$0xff] %v151
    // Predicated region
    $region26: #{tpu_custom_call.1} parent=1 // pred_check
      _
    $region27: #{tpu_custom_call.1} parent=1 // pred_check_branch
      %155 = sbr.rel (0) target = $region29
    $region28: #{tpu_custom_call.1} parent=1 // pred_region
      %s157 = ssub.s32 256, 256
      %158 = vsyncadd [#allocation4], %s157
      %s160 = sshll.u32 [#allocation8], 4
      %s161 = int_to_ptr.vmem [resolvable:$true] %s160
      %163 = dma.vmem_to_hbm [thread:$0]  %s161, 256, %s3, [#allocation4]
    $region29: #{tpu_custom_call.1} parent=1 // pred_fallthru
      _
    // Predicated region
    $region30: #{tpu_custom_call.1} parent=1 // pred_check
      _
    $region31: #{tpu_custom_call.1} parent=1 // pred_check_branch
      %165 = sbr.rel (0) target = $region33
    $region32: #{tpu_custom_call.1} parent=1 // pred_region
      %166 = dma.done [#allocation4], 256
    $region33: #{tpu_custom_call.1} parent=1 // pred_fallthru
      _
    %167 = vsyncpa [#allocation3], 1
    %168 = vsyncpa [#allocation6], 1
    %169 = vsyncpa [#allocation4], 1

</llo_original>
